<compile_context>
chip_gen: v6e
topology: v6e:2x2x1
jax: 0.10.0
libtpu: 0.0.40
codegen_flags: <defaults>
</compile_context>

<pallas_src>
import math
import functools

import jax
import jax.numpy as jnp
from jax.experimental import pallas as pl
from jax.experimental.pallas import tpu as pltpu

LANE = 128
SUBLANE = 8
MAX_TILE_ROWS = 2048  # (2048, 128) f32 tile = 1 MiB per buffer


# ----------------------------- kernel --------------------------------------- #

def _noise_kernel(scale_ref, x_ref, z_ref, o_ref, *, photon_count):
    """Elementwise hot path: scale, exp, Poisson sample (Gaussian approx), log."""
    s = scale_ref[0, 0]
    inv_s = jnp.float32(1.0) / s  # one scalar reciprocal per tile (hoisted)

    x = x_ref[...].astype(jnp.float32)
    z = z_ref[...]

    # lam = photon_count * exp(-x*s); fold sqrt(lam) into the exp:
    #   e = exp(-0.5 * x * s);  lam = pc * e * e;  sqrt(lam) = sqrt(pc) * e
    e = jnp.exp(jnp.float32(-0.5) * (x * s))
    lam = jnp.float32(photon_count) * (e * e)
    sqrt_lam = jnp.float32(math.sqrt(photon_count)) * e

    # Poisson(lam) ~ round(lam + sqrt(lam) * z), clamped at 0.
    k = jnp.round(lam + sqrt_lam * z)
    k = jnp.maximum(k, jnp.float32(0.0))
    # data[data == 0] = 1
    k = jnp.where(k == jnp.float32(0.0), jnp.float32(1.0), k)

    y = -jnp.log(k * jnp.float32(1.0 / photon_count)) * inv_s
    o_ref[...] = y.astype(o_ref.dtype)


# ----------------------------- wrapper -------------------------------------- #

def poisson_noise(data, transmittance_rate, photon_count, key):
    orig_shape = data.shape
    orig_dtype = data.dtype
    total = data.size

    # --- global mean / attenuation factor (scalar reduction, plain XLA) ---
    mean = jnp.mean(data.astype(jnp.float32))
    scale = jnp.where(
        mean == jnp.float32(0.0),
        jnp.float32(1.0),
        jnp.float32(-math.log(transmittance_rate)) / mean,
    ).reshape(1, 1).astype(jnp.float32)

    # --- choose lane-dense tiling ---
    rows = pl.cdiv(total, LANE)
    if rows <= MAX_TILE_ROWS:
        tile_rows = ((rows + SUBLANE - 1) // SUBLANE) * SUBLANE
        tile_rows = max(tile_rows, SUBLANE)
    else:
        tile_rows = MAX_TILE_ROWS
    rows_pad = ((rows + tile_rows - 1) // tile_rows) * tile_rows
    padded = rows_pad * LANE

    flat = jnp.ravel(data)
    needs_pad = padded != total
    if needs_pad:
        flat = jnp.pad(flat, (0, padded - total))
    x2d = flat.reshape(rows_pad, LANE)  # layout-only when no pad was needed

    # Standard normals for the Gaussian Poisson approximation.
    z2d = jax.random.normal(key, (rows_pad, LANE), dtype=jnp.float32)

    grid = (rows_pad // tile_rows,)
    kernel = functools.partial(_noise_kernel, photon_count=float(photon_count))

    out2d = pl.pallas_call(
        kernel,
        out_shape=jax.ShapeDtypeStruct((rows_pad, LANE), orig_dtype),
        grid_spec=pltpu.PrefetchScalarGridSpec(
            num_scalar_prefetch=0,
            grid=grid,
            in_specs=[
                pl.BlockSpec(memory_space=pltpu.MemorySpace.SMEM),      # scale (1,1)
                pl.BlockSpec((tile_rows, LANE), lambda i: (i, 0)),      # data tile
                pl.BlockSpec((tile_rows, LANE), lambda i: (i, 0)),      # normals tile
            ],
            out_specs=pl.BlockSpec((tile_rows, LANE), lambda i: (i, 0)),
        ),
        compiler_params=pltpu.CompilerParams(
            dimension_semantics=("parallel",),  # shard across v7x's 2 TCs
        ),
    )(scale, x2d, z2d)

    out_flat = out2d.ravel()
    if needs_pad:
        out_flat = out_flat[:total]
    return out_flat.reshape(orig_shape)


# ------------------------------ main ---------------------------------------- #

if __name__ == "__main__":
    key = jax.random.PRNGKey(0)
    data_key, noise_key = jax.random.split(key)

    # Sinogram-like input, NCHW.
    x = jax.random.uniform(data_key, (2, 4, 16, 16), dtype=jnp.float32,
                           minval=0.0, maxval=4.0)

    y = poisson_noise(x, transmittance_rate=0.2, photon_count=1e5,
                      key=noise_key)
    y = jax.block_until_ready(y)

    assert y.shape == x.shape and y.dtype == x.dtype
    assert bool(jnp.all(jnp.isfinite(y)))
    print("KERNEL_OK")
</pallas_src>

<mosaic_0001>
module attributes {stable_mosaic.version = 11 : i64} {
  func.func @_noise_kernel(%arg0: i32, %arg1: memref<1x1xf32, #tpu.memory_space<smem>>, %arg2: memref<16x128xf32, #tpu.memory_space<vmem>>, %arg3: memref<16x128xf32, #tpu.memory_space<vmem>>, %arg4: memref<16x128xf32, #tpu.memory_space<vmem>>) attributes {dimension_semantics = [#tpu.dimension_semantics<parallel>], iteration_bounds = array<i64: 1>, scalar_prefetch = 0 : i64, scratch_operands = 0 : i64, tpu.core_type = #tpu.core_type<tc>, window_params = [{transform_indices = @transform_0, window_bounds = array<i64: 1, 1>}, {transform_indices = @transform_1, window_bounds = array<i64: 16, 128>}, {transform_indices = @transform_2, window_bounds = array<i64: 16, 128>}, {transform_indices = @transform_3, window_bounds = array<i64: 16, 128>}]} {
    %c0 = arith.constant 0 : index
    %c0_0 = arith.constant 0 : index
    %0 = memref.load %arg1[%c0, %c0_0] : memref<1x1xf32, #tpu.memory_space<smem>>
    %cst = arith.constant 1.000000e+00 : f32
    %1 = arith.divf %cst, %0 : f32
    %c0_1 = arith.constant 0 : index
    %c0_2 = arith.constant 0 : index
    %2 = vector.load %arg2[%c0_1, %c0_2] : memref<16x128xf32, #tpu.memory_space<vmem>>, vector<16x128xf32>
    %c0_3 = arith.constant 0 : index
    %c0_4 = arith.constant 0 : index
    %3 = vector.load %arg3[%c0_3, %c0_4] : memref<16x128xf32, #tpu.memory_space<vmem>>, vector<16x128xf32>
    %4 = vector.broadcast %0 : f32 to vector<16x128xf32>
    %5 = arith.mulf %2, %4 : vector<16x128xf32>
    %cst_5 = arith.constant -5.000000e-01 : f32
    %6 = vector.broadcast %cst_5 : f32 to vector<16x128xf32>
    %7 = arith.mulf %6, %5 : vector<16x128xf32>
    %8 = math.exp %7 : vector<16x128xf32>
    %9 = arith.mulf %8, %8 : vector<16x128xf32>
    %cst_6 = arith.constant 1.000000e+05 : f32
    %10 = vector.broadcast %cst_6 : f32 to vector<16x128xf32>
    %11 = arith.mulf %10, %9 : vector<16x128xf32>
    %cst_7 = arith.constant 316.227753 : f32
    %12 = vector.broadcast %cst_7 : f32 to vector<16x128xf32>
    %13 = arith.mulf %12, %8 : vector<16x128xf32>
    %14 = arith.mulf %13, %3 : vector<16x128xf32>
    %15 = arith.addf %11, %14 : vector<16x128xf32>
    %16 = math.roundeven %15 : vector<16x128xf32>
    %cst_8 = arith.constant 0.000000e+00 : f32
    %17 = vector.broadcast %cst_8 : f32 to vector<16x128xf32>
    %18 = arith.maximumf %16, %17 : vector<16x128xf32>
    %cst_9 = arith.constant 0.000000e+00 : f32
    %19 = vector.broadcast %cst_9 : f32 to vector<16x128xf32>
    %20 = arith.cmpf oeq, %18, %19 : vector<16x128xf32>
    %cst_10 = arith.constant 1.000000e+00 : f32
    %21 = vector.broadcast %cst_10 : f32 to vector<16x128xf32>
    %22 = arith.select %20, %21, %18 : vector<16x128xi1>, vector<16x128xf32>
    %cst_11 = arith.constant 9.99999974E-6 : f32
    %23 = vector.broadcast %cst_11 : f32 to vector<16x128xf32>
    %24 = arith.mulf %22, %23 : vector<16x128xf32>
    %25 = math.log %24 : vector<16x128xf32>
    %cst_12 = arith.constant 0.000000e+00 : f32
    %26 = vector.broadcast %cst_12 : f32 to vector<16x128xf32>
    %27 = arith.subf %26, %25 : vector<16x128xf32>
    %28 = vector.broadcast %1 : f32 to vector<16x128xf32>
    %29 = arith.mulf %27, %28 : vector<16x128xf32>
    %c0_13 = arith.constant 0 : index
    %c0_14 = arith.constant 0 : index
    %30 = vector.load %arg4[%c0_13, %c0_14] : memref<16x128xf32, #tpu.memory_space<vmem>>, vector<16x128xf32>
    tpu.vector_store %arg4[%c0_13, %c0_14], %29 {strides = array<i32>} : memref<16x128xf32, #tpu.memory_space<vmem>>, vector<16x128xf32>,
    return
  }
  func.func @transform_0(%arg0: i32) -> (i32, i32) {
    %c0_i32 = arith.constant 0 : i32
    %c0_i32_0 = arith.constant 0 : i32
    %c0_i32_1 = arith.constant 0 : i32
    return %c0_i32, %c0_i32_0 : i32, i32
  }
  func.func @transform_1(%arg0: i32) -> (i32, i32) {
    %c0_i32 = arith.constant 0 : i32
    %c0_i32_0 = arith.constant 0 : i32
    return %arg0, %c0_i32 : i32, i32
  }
  func.func @transform_2(%arg0: i32) -> (i32, i32) {
    %c0_i32 = arith.constant 0 : i32
    %c0_i32_0 = arith.constant 0 : i32
    return %arg0, %c0_i32 : i32, i32
  }
  func.func @transform_3(%arg0: i32) -> (i32, i32) {
    %c0_i32 = arith.constant 0 : i32
    %c0_i32_0 = arith.constant 0 : i32
    return %arg0, %c0_i32 : i32, i32
  }
}

</mosaic_0001>

<llo_original>
// kernel: tpu_custom_call.1
$region0: #{tpu_custom_call.1}
  #allocation0 [shape = 'u32[]', space=smem, size = 0x4, offset = 0x4, fixed_abs, tag = 'smem constant byte address 0x4 - core index']
  #allocation1 [shape = 'u32[144,128]{1,0:T(1,128)}', space=vmem, size = 0x12000, scoped, tag = 'internal scratch']
  #allocation2 [shape = 'f32[1,1]{1,0:T(1,128)S(6)}', space=smem, size = 0x200, scoped, tag = 'scoped memory for tpu_custom_call.1']
  %s0 = inlined_call_operand.<no memory space> [shape: f32[1,1], index: 0, kind: input, shape index: {}]
  %s1 = inlined_call_operand.hbm [shape: f32[16,128], index: 1, kind: input, shape index: {}]
  %s2 = inlined_call_operand.hbm [shape: f32[16,128], index: 2, kind: input, shape index: {}]
  %s3 = inlined_call_operand.hbm [shape: f32[16,128], index: 3, kind: output, shape index: {}]
  %s4 = sld [smem:[#allocation0]]
  $region30: #{tpu_custom_call.1} parent=0
    _
  %s6 = ssub.s32 1, %s4
  %s7 = scalar_select 0, %s6, %s4
  %8 = sst [smem:[#allocation2]] %s0
  $region1: #{tpu_custom_call.1} parent=0
    #allocation3 [shape = 'u8[8192]{0}', space=vmem, size = 0x2000, scoped, tag = 'input window, operand 1, single buffered']
    #allocation4 [shape = 's32[1]{0}', space=sflag, size = 0x4, scoped, tag = 'scoped memory for tpu_custom_call.1']
    #allocation5 [shape = 's32[1]{0}', space=sflag, size = 0x4, scoped, tag = 'scoped memory for tpu_custom_call.1']
    #allocation6 [shape = 'u8[8192]{0}', space=vmem, size = 0x2000, scoped, tag = 'input window, operand 2, single buffered']
    #allocation7 [shape = 's32[1]{0}', space=sflag, size = 0x4, scoped, tag = 'scoped memory for tpu_custom_call.1']
    #allocation8 [shape = 'u8[8192]{0}', space=vmem, size = 0x2000, scoped, tag = 'output window, operand 0, single buffered']
    %9 = vsyncpa [#allocation4], 0
    %10 = vsyncpa [#allocation7], 0
    %11 = vsyncpa [#allocation5], 0
    // Predicated region
    $region2: #{tpu_custom_call.1} parent=1 // pred_check
      _
    $region3: #{tpu_custom_call.1} parent=1 // pred_check_branch
      %13 = sbr.rel (0) target = $region5
    $region4: #{tpu_custom_call.1} parent=1 // pred_region
      _
    $region5: #{tpu_custom_call.1} parent=1 // pred_fallthru
      _
    // Predicated region
    $region6: #{tpu_custom_call.1} parent=1 // pred_check
      _
    $region7: #{tpu_custom_call.1} parent=1 // pred_check_branch
      %15 = sbr.rel (0) target = $region9
    $region8: #{tpu_custom_call.1} parent=1 // pred_region
      %s17 = ssub.s32 256, 256
      %18 = vsyncadd [#allocation4], %s17
      %s19 = sshll.u32 [#allocation3], 4
      %s20 = int_to_ptr.vmem [resolvable:$true] %s19
      %25 = dma.hbm_to_vmem [thread:$0]  %s1, 256, %s20, [#allocation4], 128, 128, 8
    $region9: #{tpu_custom_call.1} parent=1 // pred_fallthru
      _
    // Predicated region
    $region10: #{tpu_custom_call.1} parent=1 // pred_check
      _
    $region11: #{tpu_custom_call.1} parent=1 // pred_check_branch
      %27 = sbr.rel (0) target = $region13
    $region12: #{tpu_custom_call.1} parent=1 // pred_region
      %s29 = ssub.s32 256, 256
      %30 = vsyncadd [#allocation7], %s29
      %s31 = sshll.u32 [#allocation6], 4
      %s32 = int_to_ptr.vmem [resolvable:$true] %s31
      %37 = dma.hbm_to_vmem [thread:$0]  %s2, 256, %s32, [#allocation7], 128, 128, 8
    $region13: #{tpu_custom_call.1} parent=1 // pred_fallthru
      _
    // Predicated region
    $region14: #{tpu_custom_call.1} parent=1 // pred_check
      _
    $region15: #{tpu_custom_call.1} parent=1 // pred_check_branch
      %39 = sbr.rel (0) target = $region17
    $region16: #{tpu_custom_call.1} parent=1 // pred_region
      %40 = dma.done [#allocation4], 256
    $region17: #{tpu_custom_call.1} parent=1 // pred_fallthru
      _
    // Predicated region
    $region18: #{tpu_custom_call.1} parent=1 // pred_check
      _
    $region19: #{tpu_custom_call.1} parent=1 // pred_check_branch
      %42 = sbr.rel (0) target = $region21
    $region20: #{tpu_custom_call.1} parent=1 // pred_region
      %43 = dma.done [#allocation7], 256
    $region21: #{tpu_custom_call.1} parent=1 // pred_fallthru
      _
    %s44 = sld [smem:[#allocation2]]
    %v45 = vstv %s44
    %v46 = vrcp.pop %v45
    %s47 = vtos %v46
    %v48 = vld [vmem:[#allocation3] sm:$0xff]
    %v49 = vld [vmem:[#allocation3 + $0x8] sm:$0xff]
    %v50 = vld [vmem:[#allocation6] sm:$0xff]
    %v51 = vld [vmem:[#allocation6 + $0x8] sm:$0xff]
    %v52 = vstv %s44
    %v53 = vmul.f32 %v48, %v52
    %v54 = vmul.f32 %v49, %v52
    %v55 = vmul.f32 %v53, -0.5
    %v56 = vmul.f32 %v54, -0.5
    %v57 = vmul.f32 %v55, 1.442695
    %v58 = vpow.pop %v57
    %v59 = vmul.f32 %v56, 1.442695
    %v60 = vpow.pop %v59
    %v61 = vmul.f32 %v58, %v58
    %v62 = vmul.f32 %v60, %v60
    %v63 = vmul.f32 %v61, 100000.0
    %v64 = vmul.f32 %v62, 100000.0
    %v65 = vmul.f32 %v58, 316.22775
    %v66 = vmul.f32 %v60, 316.22775
    %v67 = vmul.f32 %v65, %v50
    %v68 = vmul.f32 %v66, %v51
    %v69 = vadd.f32 %v63, %v67
    %v70 = vadd.f32 %v64, %v68
    %v71 = vround.ne.pseudo %v69
    %v72 = vround.ne.pseudo %v70
    %v73 = vmax.f32 %v71, 0.0
    %v74 = vmax.f32 %v72, 0.0
    %vm75 = vcmp.eq.f32.partialorder %v73, 0.0
    %vm76 = vcmp.eq.f32.partialorder %v74, 0.0
    %v77 = vsel %vm75, 1.0, %v73
    %v78 = vsel %vm76, 1.0, %v74
    %v79 = vmul.f32 %v77, 1e-05
    %v80 = vmul.f32 %v78, 1e-05
    %v81 = vlog2.pop %v79
    %v82 = vmul.f32 %v81, 0.6931472
    %v83 = vlog2.pop %v80
    %v84 = vmul.f32 %v83, 0.6931472
    %v85 = vsub.f32 0.0, %v82
    %v86 = vsub.f32 0.0, %v84
    %v87 = vstv %s47
    %v88 = vmul.f32 %v85, %v87
    %v89 = vmul.f32 %v86, %v87
    %90 = vst [vmem:[#allocation8] sm:$0xff] %v88
    %91 = vst [vmem:[#allocation8 + $0x8] sm:$0xff] %v89
    // Predicated region
    $region22: #{tpu_custom_call.1} parent=1 // pred_check
      _
    $region23: #{tpu_custom_call.1} parent=1 // pred_check_branch
      %93 = sbr.rel (0) target = $region25
    $region24: #{tpu_custom_call.1} parent=1 // pred_region
      %s95 = ssub.s32 256, 256
      %96 = vsyncadd [#allocation5], %s95
      %s97 = sshll.u32 [#allocation8], 4
      %s98 = int_to_ptr.vmem [resolvable:$true] %s97
      %103 = dma.vmem_to_hbm [thread:$0]  %s98, 256, %s3, [#allocation5], 128, 128, 8
    $region25: #{tpu_custom_call.1} parent=1 // pred_fallthru
      _
    // Predicated region
    $region26: #{tpu_custom_call.1} parent=1 // pred_check
      _
    $region27: #{tpu_custom_call.1} parent=1 // pred_check_branch
      %105 = sbr.rel (0) target = $region29
    $region28: #{tpu_custom_call.1} parent=1 // pred_region
      %106 = dma.done [#allocation5], 256
    $region29: #{tpu_custom_call.1} parent=1 // pred_fallthru
      _
    %107 = vsyncpa [#allocation4], 1
    %108 = vsyncpa [#allocation7], 1
    %109 = vsyncpa [#allocation5], 1

</llo_original>
